<compile_context>
chip_gen: v6e
topology: v6e:2x2x1
jax: 0.10.0
libtpu: 0.0.40
codegen_flags: <defaults>
</compile_context>

<pallas_src>
import functools

import jax
import jax.numpy as jnp
from jax.experimental import pallas as pl
from jax.experimental.pallas import tpu as pltpu

# Hyperparameters from WeightedMarginLoss.__init__ (no learnable params).
BASE_MARGIN = 4.0
MAX_NEGATIVE_TEACHER = 0.3
MIN_POSITIVE_TEACHER = 0.7  # only used for host-side warnings in the original

# Folded margin:  BASE*(1.1 - clipped/MAXNEG*0.2) == OFFSET - clipped*SLOPE
_MARGIN_OFFSET = BASE_MARGIN * 1.1
_MARGIN_SLOPE = BASE_MARGIN * 0.2 / MAX_NEGATIVE_TEACHER

LANES = 128

# TODO(synk): the PyTorch module emits host-side warnings (torch.any + .item()
# + print) when teacher scores fall outside the expected ranges; these are
# data-dependent host side effects with no clean in-kernel equivalent.


def _loss_kernel(scores_ref, labels_ref, out_ref, acc_ref, *,
                 c, steps, valid_elems, need_valid_mask):
    """One (TR, 128) lane-dense tile of the flattened (B*C,) problem."""
    j = pl.program_id(1)

    @pl.when(j == 0)
    def _():
        acc_ref[...] = jnp.zeros_like(acc_ref)

    tr = scores_ref.shape[0]
    s = scores_ref[...].astype(jnp.float32)   # (TR, 128)
    t = labels_ref[...].astype(jnp.float32)   # (TR, 128)

    lane = jax.lax.broadcasted_iota(jnp.int32, (tr, LANES), 1)
    # C divides 128  =>  C is a power of two, so % C is a cheap bitwise AND.
    is_neg = jnp.bitwise_and(lane, c - 1) != 0

    # Broadcast each group's positive (lane % C == 0) to its whole C-lane
    # group: windowed prefix-sum of the positives-only array via log2(C)
    # exact f32 lane rotations.  Every C-lane window ending at lane l contains
    # exactly one positive - the one belonging to l's group.
    pos = jnp.where(is_neg, 0.0, s)
    shift = 1
    while shift < c:
        pos = pos + pltpu.roll(pos, shift, 1)
        shift *= 2

    # get_margin(), constants folded: easy negatives get larger margins.
    clipped = jnp.clip(t, 0.0, MAX_NEGATIVE_TEACHER)
    margin = _MARGIN_OFFSET - clipped * _MARGIN_SLOPE

    val = jnp.maximum(s - pos + margin, 0.0)

    mask = is_neg
    if need_valid_mask:
        # Masks wrapper padding, the ragged last block's garbage rows and any
        # duplicate (clamped) grid block - all have flat index >= B*C.
        p = pl.program_id(0)
        blk = p * steps + j                      # un-clamped block id
        row = jax.lax.broadcasted_iota(jnp.int32, (tr, LANES), 0)
        flat = (blk * tr + row) * LANES + lane
        mask = jnp.logical_and(mask, flat < valid_elems)

    # Per-step sublane reduction (XLU) into a single-vreg accumulator.
    acc_ref[...] += jnp.sum(jnp.where(mask, val, 0.0), axis=0, keepdims=True)

    @pl.when(j == pl.num_programs(1) - 1)
    def _():
        out_ref[0, 0] = jnp.sum(acc_ref[...])


def _choose_tiling(r, itemsize_s, itemsize_l, max_rows_per_block=None):
    """Pick (num_chunks, steps, rows_per_block) for the (r, 128) problem.

    Blocks are (TR, 128) with TR a multiple of 32, so the VMEM estimate below
    is exact for f32/bf16/int8 sublane tiling.  Budget covers the two
    double-buffered inputs; the f32 accumulator is one vreg and ignored.
    """
    per_row = 2 * LANES * (itemsize_s + itemsize_l)   # 2 pipeline buffers
    budget = 24 * 1024 * 1024                          # safe on v5e/v6e/v7x
    cap = max(32, min(budget // per_row, 8192) // 32 * 32)
    if max_rows_per_block is not None:
        cap = max(8, min(cap, max_rows_per_block // 8 * 8))

    if r <= max(cap // 4, 16):
        # Small problem: one block covering the whole array (block dim equal
        # to the full array dim is always legal, even if not 8-aligned).
        return 1, 1, r

    tr = min(cap, pl.cdiv(pl.cdiv(r, 4), 32) * 32)  # >=4 blocks for overlap
    total_blocks = pl.cdiv(r, tr)
    num_chunks = 2 if total_blocks >= 2 else 1      # megacore-friendly split
    steps = pl.cdiv(total_blocks, num_chunks)
    return num_chunks, steps, tr


def weighted_margin_loss(scores: jax.Array, labels: jax.Array,
                         *, max_rows_per_block: int | None = None) -> jax.Array:
    if scores.shape != labels.shape:
        raise ValueError(
            f"Shape mismatch: scores {scores.shape} != labels {labels.shape}")
    if scores.ndim != 2:
        raise ValueError(f"Expected 2-D (batch, candidates), got {scores.shape}")
    b, c = scores.shape
    if c < 2:
        raise ValueError("Need at least one negative candidate (C >= 2)")

    if LANES % c != 0:
        # TODO(synk): the lane-dense fast path needs num_candidates | 128;
        # other candidate counts fall back to plain JAX (same math).
        return _reference(scores, labels)

    # Keep bf16 arrays as bf16 in HBM (half the DMA bytes); everything else
    # is fed as f32.  Compute is always f32 inside the kernel.
    def _as_kernel_dtype(x):
        return x if x.dtype in (jnp.bfloat16, jnp.float32) else x.astype(jnp.float32)

    scores = _as_kernel_dtype(scores)
    labels = _as_kernel_dtype(labels)

    g = LANES // c                 # batch rows per 128-lane register row
    b_pad = pl.cdiv(b, g) * g
    if b_pad != b:
        # Ragged batch: pad rows so the free flat reshape to (R, 128) exists.
        # This is the only path that copies the inputs; padded elements are
        # masked in-kernel (flat index >= B*C), so the pad value is irrelevant.
        pad = ((0, b_pad - b), (0, 0))
        scores = jnp.pad(scores, pad)
        labels = jnp.pad(labels, pad)
    r = (b_pad * c) // LANES

    # Free contiguous reshape (bitcast) into the lane-dense layout.
    scores2 = scores.reshape(r, LANES)
    labels2 = labels.reshape(r, LANES)

    num_chunks, steps, tr = _choose_tiling(
        r, scores2.dtype.itemsize, labels2.dtype.itemsize, max_rows_per_block)
    total_blocks = pl.cdiv(r, tr)
    has_dup = num_chunks * steps != total_blocks
    need_valid_mask = (b_pad != b) or (r % tr != 0) or has_dup

    last_block = total_blocks - 1
    if has_dup:
        # Clamp so the pipeline never DMAs a fully out-of-range block; the
        # duplicate block self-masks in-kernel via the flat-index mask.
        def in_map(p, j):
            return (jnp.minimum(p * steps + j, last_block), 0)
    else:
        def in_map(p, j):
            return (p * steps + j, 0)

    kernel = functools.partial(
        _loss_kernel, c=c, steps=steps, valid_elems=b * c,
        need_valid_mask=need_valid_mask)

    partials = pl.pallas_call(
        kernel,
        out_shape=jax.ShapeDtypeStruct((num_chunks, 1), jnp.float32),
        grid_spec=pltpu.PrefetchScalarGridSpec(
            num_scalar_prefetch=0,
            grid=(num_chunks, steps),
            in_specs=[
                pl.BlockSpec((tr, LANES), in_map),
                pl.BlockSpec((tr, LANES), in_map),
            ],
            out_specs=pl.BlockSpec((1, 1), lambda p, j: (p, 0),
                                   memory_space=pltpu.MemorySpace.SMEM),
            scratch_shapes=[pltpu.VMEM((1, LANES), jnp.float32)],
        ),
        compiler_params=pltpu.CompilerParams(
            dimension_semantics=("parallel", "arbitrary"),
            vmem_limit_bytes=32 * 1024 * 1024,
        ),
    )(scores2, labels2)

    # Per-chunk partial sums -> mean over the real (unpadded) negatives.
    return jnp.sum(partials) / jnp.float32(b * (c - 1))


def _reference(scores, labels):
    scores = scores.astype(jnp.float32)
    labels = labels.astype(jnp.float32)
    positives = scores[:, 0:1]
    negatives = scores[:, 1:]
    teacher = labels[:, 1:]
    clipped = jnp.clip(teacher, 0.0, MAX_NEGATIVE_TEACHER)
    margin = BASE_MARGIN * (1.1 - clipped / MAX_NEGATIVE_TEACHER * 0.2)
    diffs = negatives - positives + margin
    return jnp.mean(jnp.maximum(diffs, 0.0))


if __name__ == "__main__":
    key = jax.random.PRNGKey(0)
    k1, k2, k3, k4, k5, k6, k7 = jax.random.split(key, 7)

    # --- Case 1: tiny aligned batch, single (1, 128) block -------------------
    b1, c1 = 16, 8  # column 0 positive, rest negatives
    s1 = jax.random.normal(k1, (b1, c1), dtype=jnp.float32)
    pos_lab = 0.7 + 0.3 * jax.random.uniform(k2, (b1, 1), dtype=jnp.float32)
    neg_lab = 0.3 * jax.random.uniform(k3, (b1, c1 - 1), dtype=jnp.float32)
    l1 = jnp.concatenate([pos_lab, neg_lab], axis=1)

    out1 = jax.block_until_ready(weighted_margin_loss(s1, l1))
    ref1 = _reference(s1, l1)
    assert jnp.allclose(out1, ref1, rtol=1e-5, atol=1e-5), (out1, ref1)

    # --- Case 2: ragged batch (B % (128/C) != 0) + forced tiny blocks to
    #     exercise padding mask, ragged last block, duplicate-block skip,
    #     multi-step accumulation and the 2-chunk parallel axis --------------
    b2, c2 = 300, 8
    s2 = jax.random.normal(k4, (b2, c2), dtype=jnp.float32)
    l2 = jax.random.uniform(k5, (b2, c2), dtype=jnp.float32)

    out2 = jax.block_until_ready(
        weighted_margin_loss(s2, l2, max_rows_per_block=8))
    ref2 = _reference(s2, l2)
    assert jnp.allclose(out2, ref2, rtol=1e-5, atol=1e-5), (out2, ref2)

    # --- Case 3: bf16 inputs stay bf16 in HBM, upcast in-kernel -------------
    b3, c3 = 512, 16
    s3 = jax.random.normal(k6, (b3, c3), dtype=jnp.float32).astype(jnp.bfloat16)
    l3 = jax.random.uniform(k7, (b3, c3), dtype=jnp.float32).astype(jnp.bfloat16)

    out3 = jax.block_until_ready(weighted_margin_loss(s3, l3))
    ref3 = _reference(s3, l3)
    assert jnp.allclose(out3, ref3, rtol=1e-5, atol=1e-5), (out3, ref3)

    print("KERNEL_OK")
</pallas_src>

<mosaic_0001>
module attributes {stable_mosaic.version = 11 : i64} {
  func.func @_loss_kernel(%arg0: i32, %arg1: i32, %arg2: memref<1x128xf32, #tpu.memory_space<vmem>>, %arg3: memref<1x128xf32, #tpu.memory_space<vmem>>, %arg4: memref<1x1xf32, #tpu.memory_space<smem>>, %arg5: memref<1x128xf32, #tpu.memory_space<vmem>>) attributes {dimension_semantics = [#tpu.dimension_semantics<parallel>, #tpu.dimension_semantics<arbitrary>], iteration_bounds = array<i64: 1, 1>, scalar_prefetch = 0 : i64, scratch_operands = 1 : i64, tpu.core_type = #tpu.core_type<tc>, window_params = [{transform_indices = @transform_0, window_bounds = array<i64: 1, 128>}, {transform_indices = @transform_1, window_bounds = array<i64: 1, 128>}, {transform_indices = @transform_2, window_bounds = array<i64: 1, 1>}]} {
    %c0_i32 = arith.constant 0 : i32
    %0 = arith.cmpi eq, %arg1, %c0_i32 : i32
    %1 = arith.extui %0 : i1 to i32
    %c0_i32_0 = arith.constant 0 : i32
    %2 = arith.cmpi ne, %1, %c0_i32_0 : i32
    scf.if %2 {
      %cst_18 = arith.constant 0.000000e+00 : f32
      %40 = vector.broadcast %cst_18 : f32 to vector<1x128xf32>
      %c0_19 = arith.constant 0 : index
      %c0_20 = arith.constant 0 : index
      %41 = vector.load %arg5[%c0_19, %c0_20] : memref<1x128xf32, #tpu.memory_space<vmem>>, vector<1x128xf32>
      tpu.vector_store %arg5[%c0_19, %c0_20], %40 {strides = array<i32>} : memref<1x128xf32, #tpu.memory_space<vmem>>, vector<1x128xf32>,
    } else {
    }
    %c0 = arith.constant 0 : index
    %c0_1 = arith.constant 0 : index
    %3 = vector.load %arg2[%c0, %c0_1] : memref<1x128xf32, #tpu.memory_space<vmem>>, vector<1x128xf32>
    %c0_2 = arith.constant 0 : index
    %c0_3 = arith.constant 0 : index
    %4 = vector.load %arg3[%c0_2, %c0_3] : memref<1x128xf32, #tpu.memory_space<vmem>>, vector<1x128xf32>
    %5 = tpu.iota {dimensions = array<i32: 1>} : vector<1x128xi32>
    %c7_i32 = arith.constant 7 : i32
    %6 = vector.broadcast %c7_i32 : i32 to vector<1x128xi32>
    %7 = arith.andi %5, %6 : vector<1x128xi32>
    %c0_i32_4 = arith.constant 0 : i32
    %8 = vector.broadcast %c0_i32_4 : i32 to vector<1x128xi32>
    %9 = arith.cmpi ne, %7, %8 : vector<1x128xi32>
    %cst = arith.constant 0.000000e+00 : f32
    %10 = vector.broadcast %cst : f32 to vector<1x128xf32>
    %11 = arith.select %9, %10, %3 : vector<1x128xi1>, vector<1x128xf32>
    %c1_i32 = arith.constant 1 : i32
    %12 = tpu.dynamic_rotate %11 by %c1_i32 dim 1 : vector<1x128xf32>, i32 -> vector<1x128xf32>
    %13 = arith.addf %11, %12 : vector<1x128xf32>
    %c2_i32 = arith.constant 2 : i32
    %14 = tpu.dynamic_rotate %13 by %c2_i32 dim 1 : vector<1x128xf32>, i32 -> vector<1x128xf32>
    %15 = arith.addf %13, %14 : vector<1x128xf32>
    %c4_i32 = arith.constant 4 : i32
    %16 = tpu.dynamic_rotate %15 by %c4_i32 dim 1 : vector<1x128xf32>, i32 -> vector<1x128xf32>
    %17 = arith.addf %15, %16 : vector<1x128xf32>
    %cst_5 = arith.constant 0.000000e+00 : f32
    %cst_6 = arith.constant 3.000000e-01 : f32
    %18 = vector.broadcast %cst_5 : f32 to vector<1x128xf32>
    %19 = arith.maximumf %18, %4 : vector<1x128xf32>
    %20 = vector.broadcast %cst_6 : f32 to vector<1x128xf32>
    %21 = arith.minimumf %20, %19 : vector<1x128xf32>
    %cst_7 = arith.constant 2.66666675 : f32
    %22 = vector.broadcast %cst_7 : f32 to vector<1x128xf32>
    %23 = arith.mulf %21, %22 : vector<1x128xf32>
    %cst_8 = arith.constant 4.400000e+00 : f32
    %24 = vector.broadcast %cst_8 : f32 to vector<1x128xf32>
    %25 = arith.subf %24, %23 : vector<1x128xf32>
    %26 = arith.subf %3, %17 : vector<1x128xf32>
    %27 = arith.addf %26, %25 : vector<1x128xf32>
    %cst_9 = arith.constant 0.000000e+00 : f32
    %28 = vector.broadcast %cst_9 : f32 to vector<1x128xf32>
    %29 = arith.maximumf %27, %28 : vector<1x128xf32>
    %c0_10 = arith.constant 0 : index
    %c0_11 = arith.constant 0 : index
    %30 = vector.load %arg5[%c0_10, %c0_11] : memref<1x128xf32, #tpu.memory_space<vmem>>, vector<1x128xf32>
    %cst_12 = arith.constant 0.000000e+00 : f32
    %31 = vector.broadcast %cst_12 : f32 to vector<1x128xf32>
    %32 = arith.select %9, %29, %31 : vector<1x128xi1>, vector<1x128xf32>
    %cst_13 = arith.constant dense<0.000000e+00> : vector<128xf32>
    %33 = vector.multi_reduction <add>, %32, %cst_13 [0] : vector<1x128xf32> to vector<128xf32>
    %34 = vector.shape_cast %33 : vector<128xf32> to vector<1x128xf32>
    %35 = arith.addf %30, %34 : vector<1x128xf32>
    %c0_14 = arith.constant 0 : index
    %c0_15 = arith.constant 0 : index
    %36 = vector.load %arg5[%c0_14, %c0_15] : memref<1x128xf32, #tpu.memory_space<vmem>>, vector<1x128xf32>
    tpu.vector_store %arg5[%c0_14, %c0_15], %35 {strides = array<i32>} : memref<1x128xf32, #tpu.memory_space<vmem>>, vector<1x128xf32>,
    %c0_i32_16 = arith.constant 0 : i32
    %37 = arith.cmpi eq, %arg1, %c0_i32_16 : i32
    %38 = arith.extui %37 : i1 to i32
    %c0_i32_17 = arith.constant 0 : i32
    %39 = arith.cmpi ne, %38, %c0_i32_17 : i32
    scf.if %39 {
      %c0_18 = arith.constant 0 : index
      %c0_19 = arith.constant 0 : index
      %40 = vector.load %arg5[%c0_18, %c0_19] : memref<1x128xf32, #tpu.memory_space<vmem>>, vector<1x128xf32>
      %41 = vector.shape_cast %40 : vector<1x128xf32> to vector<1x1x128xf32>
      %cst_20 = arith.constant dense<0.000000e+00> : vector<1xf32>
      %42 = vector.multi_reduction <add>, %41, %cst_20 [1, 2] : vector<1x1x128xf32> to vector<1xf32>
      %43 = vector.shape_cast %42 : vector<1xf32> to vector<1x1x1xf32>
      %44 = vector.extract %43[0, 0, 0] : f32 from vector<1x1x1xf32>
      %c0_21 = arith.constant 0 : index
      %c0_22 = arith.constant 0 : index
      %45 = memref.load %arg4[%c0_21, %c0_22] : memref<1x1xf32, #tpu.memory_space<smem>>
      memref.store %44, %arg4[%c0_21, %c0_22] : memref<1x1xf32, #tpu.memory_space<smem>>
    } else {
    }
    return
  }
  func.func @transform_0(%arg0: i32, %arg1: i32) -> (i32, i32) {
    %c1_i32 = arith.constant 1 : i32
    %0 = arith.muli %arg0, %c1_i32 : i32
    %1 = arith.addi %0, %arg1 : i32
    %c0_i32 = arith.constant 0 : i32
    %c0_i32_0 = arith.constant 0 : i32
    return %1, %c0_i32 : i32, i32
  }
  func.func @transform_1(%arg0: i32, %arg1: i32) -> (i32, i32) {
    %c1_i32 = arith.constant 1 : i32
    %0 = arith.muli %arg0, %c1_i32 : i32
    %1 = arith.addi %0, %arg1 : i32
    %c0_i32 = arith.constant 0 : i32
    %c0_i32_0 = arith.constant 0 : i32
    return %1, %c0_i32 : i32, i32
  }
  func.func @transform_2(%arg0: i32, %arg1: i32) -> (i32, i32) {
    %c0_i32 = arith.constant 0 : i32
    %c0_i32_0 = arith.constant 0 : i32
    return %arg0, %c0_i32 : i32, i32
  }
}

</mosaic_0001>

<llo_original>
// kernel: tpu_custom_call.1
$region0: #{tpu_custom_call.1}
  #allocation0 [shape = 'u32[]', space=smem, size = 0x4, offset = 0x4, fixed_abs, tag = 'smem constant byte address 0x4 - core index']
  #allocation1 [shape = 'u32[144,128]{1,0:T(1,128)}', space=vmem, size = 0x12000, scoped, tag = 'internal scratch']
  #allocation2 [shape = 'f32[1,128]{1,0:T(1,128)}', space=vmem, size = 0x200, scoped, tag = 'scratch operand']
  %s0 = inlined_call_operand.hbm [shape: f32[1,128], index: 0, kind: input, shape index: {}]
  %s1 = inlined_call_operand.vmem [shape: f32[1,128], index: 1, kind: input, shape index: {}]
  %s2 = inlined_call_operand.hbm [shape: f32[1,1], index: 2, kind: output, shape index: {}]
  %s3 = sld [smem:[#allocation0]]
  $region30: #{tpu_custom_call.1} parent=0
    _
  %s5 = ssub.s32 1, %s3
  %s6 = scalar_select 0, %s5, %s3
  $region1: #{tpu_custom_call.1} parent=0
    #allocation3 [shape = 'u8[512]{0}', space=vmem, size = 0x400, scoped, tag = 'input window, operand 0, single buffered']
    #allocation4 [shape = 's32[1]{0}', space=sflag, size = 0x4, scoped, tag = 'scoped memory for tpu_custom_call.1']
    #allocation5 [shape = 's32[1]{0}', space=sflag, size = 0x4, scoped, tag = 'scoped memory for tpu_custom_call.1']
    #allocation6 [shape = 'u8[512]{0}', space=smem, size = 0x200, scoped, tag = 'output window, operand 0, single buffered']
    %7 = vsyncpa [#allocation4], 0
    %8 = vsyncpa [#allocation5], 0
    // Predicated region
    $region2: #{tpu_custom_call.1} parent=1 // pred_check
      _
    $region3: #{tpu_custom_call.1} parent=1 // pred_check_branch
      %10 = sbr.rel (0) target = $region5
    $region4: #{tpu_custom_call.1} parent=1 // pred_region
      %s11 = sadd.s32 0, 0
      %s13 = ssub.s32 16, 16
      %14 = vsyncadd [#allocation4], %s13
      %s15 = smul.addr %s11, 16
      %s16 = scalar_lea.hbm %s0, %s15
      %s18 = sshll.u32 [#allocation3], 4
      %s19 = int_to_ptr.vmem [resolvable:$true] %s18
      %21 = dma.hbm_to_vmem [thread:$0]  %s16, 16, %s19, [#allocation4]
    $region5: #{tpu_custom_call.1} parent=1 // pred_fallthru
      _
    // Predicated region
    $region6: #{tpu_custom_call.1} parent=1 // pred_check
      _
    $region7: #{tpu_custom_call.1} parent=1 // pred_check_branch
      %23 = sbr.rel (0) target = $region9
    $region8: #{tpu_custom_call.1} parent=1 // pred_region
      %s24 = sadd.s32 0, 0
      %p25 = scmp.lt.s32.totalorder %s24, 0
      %s26 = scalar_select %p25, %s24, 0
      %s27 = scalar_lea.vmem %s1, %s26
      %s28 = sadd.s32 0, 0
    $region9: #{tpu_custom_call.1} parent=1 // pred_fallthru
      _
    // Predicated region
    $region10: #{tpu_custom_call.1} parent=1 // pred_check
      _
    $region11: #{tpu_custom_call.1} parent=1 // pred_check_branch
      %30 = sbr.rel (0) target = $region13
    $region12: #{tpu_custom_call.1} parent=1 // pred_region
      %31 = dma.done [#allocation4], 16
    $region13: #{tpu_custom_call.1} parent=1 // pred_fallthru
      _
    %s32 = sadd.s32 0, 0
    %p33 = scmp.lt.s32.totalorder %s32, 0
    %s34 = scalar_select %p33, %s32, 0
    %s35 = scalar_lea.vmem %s1, %s34
    %s36 = sadd.s32 0, 0
    %s37 = sadd.s32 0, 0
    %p38 = scmp.lt.s32.totalorder %s37, 0
    %s39 = scalar_select %p38, %s37, 0
    %s40 = scalar_lea.vmem %s1, %s39
    %s41 = sadd.s32 0, 0
    %p42 = scmp.eq.s32.totalorder 0, 0
    // Predicated region
    $region14: #{tpu_custom_call.1} parent=1 // pred_check
      %p43 = pneg %p42
    $region15: #{tpu_custom_call.1} parent=1 // pred_check_branch
      %45 = sbr.rel (%p43) target = $region17
    $region16: #{tpu_custom_call.1} parent=1 // pred_region
      %46 = vst [vmem:[#allocation2] sm:$0x1] 0.0
    $region17: #{tpu_custom_call.1} parent=1 // pred_fallthru
      _
    %v47 = vld [vmem:[#allocation3] sm:$0x1]
    %v48 = vld [vmem:[%s40] sm:$0x1]
    %v49 = vlaneseq
    %v50 = vand.u32 %v49, 127
    %v51 = vand.u32 %v50, 7
    %vm52 = vcmp.ne.s32.totalorder %v51, 0
    %v53 = vsel %vm52, 0.0, %v47
    %54 = vrot.lane.b32.xlu0 %v53, 1
    %v55 = vpop.permute.xlu0 %54
    %v56 = vadd.f32 %v53, %v55
    %57 = vrot.lane.b32.xlu0 %v56, 2
    %v58 = vpop.permute.xlu0 %57
    %v59 = vadd.f32 %v56, %v58
    %60 = vrot.lane.b32.xlu0 %v59, 4
    %v61 = vpop.permute.xlu0 %60
    %v62 = vadd.f32 %v59, %v61
    %v63 = vmax.f32 %v48, 0.0
    %v64 = vmin.f32 %v63, 0.3
    %v65 = vmul.f32 %v64, 2.6666667
    %v66 = vsub.f32 4.4, %v65
    %v67 = vsub.f32 %v47, %v62
    %v68 = vadd.f32 %v67, %v66
    %v69 = vmax.f32 %v68, 0.0
    %v70 = vld [vmem:[#allocation2] sm:$0x1]
    %v71 = vsel %vm52, %v69, 0.0
    %v72 = vadd.f32 %v71, 0.0
    %v73 = vadd.f32 %v70, %v72
    %74 = vst [vmem:[#allocation2] sm:$0x1] %v73
    // Predicated region
    $region18: #{tpu_custom_call.1} parent=1 // pred_check
      %p75 = pneg %p42
    $region19: #{tpu_custom_call.1} parent=1 // pred_check_branch
      %77 = sbr.rel (%p75) target = $region21
    $region20: #{tpu_custom_call.1} parent=1 // pred_region
      %v78 = vld [vmem:[#allocation2] sm:$0x1]
      %vm79 = vcmask 1040384
      %v80 = vsel %vm79, %v78, 0.0
      %81 = vadd.xlane.f32.xlu0 %v80
      %v82 = vpop.xlane.xlu0 %81
      %v83 = vrot.slane %v82, 4
      %v84 = vadd.f32 %v82, %v83
      %v85 = vrot.slane %v84, 2
      %v86 = vadd.f32 %v84, %v85
      %v87 = vrot.slane %v86, 1
      %v88 = vadd.f32 %v86, %v87
      %s89 = vtos %v88
      %s90 = scalar_lea.smem [#allocation6], 0
      %91 = sst [smem:[%s90]] %s89
    $region21: #{tpu_custom_call.1} parent=1 // pred_fallthru
      _
    // Predicated region
    $region22: #{tpu_custom_call.1} parent=1 // pred_check
      _
    $region23: #{tpu_custom_call.1} parent=1 // pred_check_branch
      %93 = sbr.rel (0) target = $region25
    $region24: #{tpu_custom_call.1} parent=1 // pred_region
      %s95 = ssub.s32 16, 16
      %96 = vsyncadd [#allocation5], %s95
      %99 = dma.smem_to_hbm [#allocation6], 16, %s2, [#allocation5]
    $region25: #{tpu_custom_call.1} parent=1 // pred_fallthru
      _
    // Predicated region
    $region26: #{tpu_custom_call.1} parent=1 // pred_check
      _
    $region27: #{tpu_custom_call.1} parent=1 // pred_check_branch
      %101 = sbr.rel (0) target = $region29
    $region28: #{tpu_custom_call.1} parent=1 // pred_region
      %102 = dma.done [#allocation5], 16
    $region29: #{tpu_custom_call.1} parent=1 // pred_fallthru
      _
    %103 = sfence
    %104 = vsyncpa [#allocation4], 1
    %105 = vsyncpa [#allocation5], 1

</llo_original>
